<compile_context>
chip_gen: v7x
topology: tpu7x:2x2x1
jax: 0.10.0
libtpu: 0.0.40
codegen_flags: <defaults>
</compile_context>

<pallas_src>
import jax
import jax.numpy as jnp
from jax import lax
from jax.experimental import pallas as pl
from jax.experimental.pallas import tpu as pltpu


def _round_up(x, m):
    return (x + m - 1) // m * m


# --------------------------------------------------------------------------
# Kernel: one grid step = one chunk of Tc GRU time steps.
# --------------------------------------------------------------------------
def _char_gru_chunk_kernel(tok_ref,      # SMEM (Tpad, B) int32   (scalar prefetch)
                           h0_ref,       # VMEM (Bp, Hp) f32      (resident)
                           gi_tab_ref,   # VMEM (Vp, 3Hp) wdt     (resident: emb@W_ih^T + biases)
                           whh_ref,      # VMEM (Hp, 3Hp) wdt     (resident: W_hh^T, gates r|z|n)
                           bhhn_ref,     # VMEM (1, Hp) f32       (resident: b_hh_n)
                           wdec_ref,     # VMEM (Hp, Op) wdt      (resident: W_dec^T)
                           bdec_ref,     # VMEM (1, Op) f32       (resident)
                           logits_ref,   # VMEM out block (Tc*Bp, Op) f32
                           hseq_ref,     # VMEM out block (Tc*Bp, Hp) f32
                           gi_s,         # VMEM scratch (Tc*Bp, 3Hp) f32
                           hcarry_s):    # VMEM scratch (Bp, Hp) f32 (cross-chunk carry)
    c = pl.program_id(0)
    Bp, Hp = h0_ref.shape
    Vp = gi_tab_ref.shape[0]
    TcBp = hseq_ref.shape[0]
    Tc = TcBp // Bp
    B = tok_ref.shape[1]                 # real (unpadded) batch size, static
    w_dtype = whh_ref.dtype

    @pl.when(c == 0)
    def _():
        hcarry_s[...] = h0_ref[...]

    # ---- Chunk preamble (OFF the serial chain): x-side gate inputs for all
    # Tc steps via one exact one-hot row gather on the MXU.
    row = lax.broadcasted_iota(jnp.int32, (TcBp, Vp), 0)
    lane = lax.broadcasted_iota(jnp.int32, (TcBp, Vp), 1)
    tok_map = jnp.full((TcBp, Vp), -1, jnp.int32)        # pad batch rows -> zero one-hot
    for i in range(Tc):                                  # tiny static loop (Tc*B scalar reads);
        for b in range(B):                               # for large B switch to a vector compare
            tok_map = jnp.where(row == i * Bp + b, tok_ref[c * Tc + i, b], tok_map)
    onehot = (lane == tok_map).astype(jnp.float32).astype(w_dtype)
    gi_s[...] = jnp.dot(onehot, gi_tab_ref[...],
                        preferred_element_type=jnp.float32)      # (Tc*Bp, 3Hp)

    # ---- Serial recurrence: only h @ W_hh + gate elementwise math per step.
    # h is carried in vector registers; no VMEM roundtrip on the chain.
    whh = whh_ref[...]
    bhh_n = bhhn_ref[...]
    h = hcarry_s[...]
    for i in range(Tc):
        gi = gi_s[i * Bp:(i + 1) * Bp, :]                        # (Bp, 3Hp), precomputed
        gh = jnp.dot(h.astype(w_dtype), whh,
                     preferred_element_type=jnp.float32)         # (Bp, 3Hp)
        r = jax.nn.sigmoid(gi[:, 0:Hp] + gh[:, 0:Hp])
        z = jax.nn.sigmoid(gi[:, Hp:2 * Hp] + gh[:, Hp:2 * Hp])
        n = jnp.tanh(gi[:, 2 * Hp:3 * Hp] + r * (gh[:, 2 * Hp:3 * Hp] + bhh_n))
        h = (1.0 - z) * n + z * h                                # (Bp, Hp)
        hseq_ref[i * Bp:(i + 1) * Bp, :] = h                     # needed for deferred decoder
    hcarry_s[...] = h                                            # carry to next chunk

    # ---- Deferred decoder: ONE big lane-dense matmul per chunk.
    hs = hseq_ref[...]                                           # (Tc*Bp, Hp)
    logits_ref[...] = (jnp.dot(hs.astype(w_dtype), wdec_ref[...],
                               preferred_element_type=jnp.float32)
                       + bdec_ref[...]).astype(logits_ref.dtype)


# --------------------------------------------------------------------------
# Parameter construction / packing.
# --------------------------------------------------------------------------
def init_params(key, input_size, hidden_size, output_size):
    """PyTorch-layout params: nn.Embedding / nn.GRU(weight_*_l0, gates r|z|n) / nn.Linear."""
    ks = jax.random.split(key, 7)
    H, V, O = hidden_size, input_size, output_size
    s = 1.0 / jnp.sqrt(jnp.float32(H))
    u = lambda k, shape: jax.random.uniform(k, shape, jnp.float32, -s, s)
    return {
        "emb":   jax.random.normal(ks[0], (V, H), jnp.float32),   # nn.Embedding(V, H)
        "w_ih":  u(ks[1], (3 * H, H)),                            # GRU weight_ih_l0
        "w_hh":  u(ks[2], (3 * H, H)),                            # GRU weight_hh_l0
        "b_ih":  u(ks[3], (3 * H,)),
        "b_hh":  u(ks[4], (3 * H,)),
        "w_dec": u(ks[5], (O, H)),                                # nn.Linear(H, O).weight
        "b_dec": u(ks[6], (O,)),
    }


def pack_params(p, weight_dtype=jnp.float32, lane=128):
    """Pack PyTorch-layout params into padded, lane-aligned kernel params.

    gi_table[v] = emb[v] @ W_ih^T + b_ih (+ b_hh_r, b_hh_z folded in), gate
    blocks [r | z | n] each Hp lanes wide.  b_hh_n stays separate because
    PyTorch's n-gate is  n = tanh(gi_n + b_ih_n + r*(gh_n + b_hh_n)).
    """
    V, H = p["emb"].shape
    O = p["w_dec"].shape[0]
    Hp = _round_up(H, lane)
    Op = _round_up(O, lane)
    Vp = _round_up(V, lane)
    prec = lax.Precision.HIGHEST

    gi = jnp.dot(p["emb"], p["w_ih"].T, precision=prec) + p["b_ih"][None, :]   # (V, 3H)
    gi = gi.at[:, 0:2 * H].add(p["b_hh"][None, 0:2 * H])                       # fold b_hh_{r,z}

    gi_table = jnp.zeros((Vp, 3 * Hp), jnp.float32)
    whh = jnp.zeros((Hp, 3 * Hp), jnp.float32)
    w_hh_t = p["w_hh"].T                                                       # (H, 3H)
    for g in range(3):                      # gate blocks [r | z | n], each Hp lanes wide
        gi_table = gi_table.at[:V, g * Hp:g * Hp + H].set(gi[:, g * H:(g + 1) * H])
        whh = whh.at[:H, g * Hp:g * Hp + H].set(w_hh_t[:, g * H:(g + 1) * H])

    b_hh_n = jnp.zeros((1, Hp), jnp.float32).at[0, :H].set(p["b_hh"][2 * H:3 * H])
    w_dec = jnp.zeros((Hp, Op), jnp.float32).at[:H, :O].set(p["w_dec"].T)
    b_dec = jnp.zeros((1, Op), jnp.float32).at[0, :O].set(p["b_dec"])

    return {
        "gi_table": gi_table.astype(weight_dtype),
        "w_hh": whh.astype(weight_dtype),
        "b_hh_n": b_hh_n,                   # f32 (added after the f32-accumulated matmul)
        "w_dec": w_dec.astype(weight_dtype),
        "b_dec": b_dec,                     # f32
        "dims": (V, H, O),
        "padded": (Vp, Hp, Op),
    }


# --------------------------------------------------------------------------
# Wrappers.
# --------------------------------------------------------------------------
def char_rnn_forward_seq(tokens, hidden, packed, time_chunk=8):
    """tokens: (T, B) int32; hidden: (1, B, H) f32.
    Whole sequence decoded in ONE pallas_call, time chunked by `time_chunk`.
    Returns (logits (T, B, O), final hidden (1, B, H)).
    NOTE: token ids outside [0, V) give a zero embedding row instead of the
    error PyTorch's nn.Embedding would raise."""
    V, H, O = packed["dims"]
    Vp, Hp, Op = packed["padded"]
    T, B = tokens.shape
    Bp = _round_up(max(B, 8), 8)
    Tc = max(1, min(time_chunk, T))
    Tpad = _round_up(T, Tc)
    n_chunks = Tpad // Tc

    tok_pad = jnp.zeros((Tpad, B), jnp.int32).at[:T].set(tokens.astype(jnp.int32))
    h0_pad = jnp.zeros((Bp, Hp), jnp.float32).at[:B, :H].set(hidden[0])

    # VMEM budget (resident weights double-buffered by default + out blocks + scratch).
    def nbytes(a):
        return a.size * a.dtype.itemsize
    est = (2 * (nbytes(h0_pad) + nbytes(packed["gi_table"]) + nbytes(packed["w_hh"])
                + nbytes(packed["b_hh_n"]) + nbytes(packed["w_dec"]) + nbytes(packed["b_dec"])
                + Tc * Bp * (Op + Hp) * 4)
           + Tc * Bp * 3 * Hp * 4 + Bp * Hp * 4)
    vmem_limit = int(min(max(est + (8 << 20), 32 << 20), 100 << 20))

    grid_spec = pltpu.PrefetchScalarGridSpec(
        num_scalar_prefetch=1,               # tokens -> SMEM
        grid=(n_chunks,),
        in_specs=[
            # Constant index maps: each weight is DMA'd into VMEM once and
            # stays resident for the whole sequence.
            pl.BlockSpec((Bp, Hp), lambda c, tok: (0, 0)),            # h0
            pl.BlockSpec((Vp, 3 * Hp), lambda c, tok: (0, 0)),        # gi_table
            pl.BlockSpec((Hp, 3 * Hp), lambda c, tok: (0, 0)),        # W_hh (gates r|z|n)
            pl.BlockSpec((1, Hp), lambda c, tok: (0, 0)),             # b_hh_n
            pl.BlockSpec((Hp, Op), lambda c, tok: (0, 0)),            # decoder W^T
            pl.BlockSpec((1, Op), lambda c, tok: (0, 0)),             # decoder bias
        ],
        out_specs=(
            pl.BlockSpec((Tc * Bp, Op), lambda c, tok: (c, 0)),       # per-chunk logits
            pl.BlockSpec((Tc * Bp, Hp), lambda c, tok: (c, 0)),       # per-chunk hidden seq
        ),
        scratch_shapes=[
            pltpu.VMEM((Tc * Bp, 3 * Hp), jnp.float32),               # gi for the chunk
            pltpu.VMEM((Bp, Hp), jnp.float32),                        # cross-chunk h carry
        ],
    )

    logits_flat, hseq_flat = pl.pallas_call(
        _char_gru_chunk_kernel,
        out_shape=(
            jax.ShapeDtypeStruct((Tpad * Bp, Op), jnp.float32),
            jax.ShapeDtypeStruct((Tpad * Bp, Hp), jnp.float32),
        ),
        grid_spec=grid_spec,
        compiler_params=pltpu.CompilerParams(
            dimension_semantics=("arbitrary",),      # sequential recurrence over chunks
            vmem_limit_bytes=vmem_limit,
        ),
    )(tok_pad, h0_pad,
      packed["gi_table"], packed["w_hh"], packed["b_hh_n"],
      packed["w_dec"], packed["b_dec"])

    logits = logits_flat.reshape(Tpad, Bp, Op)[:T, :B, :O]
    hidden_out = hseq_flat.reshape(Tpad, Bp, Hp)[T - 1, :B, :H][None, :, :]
    return logits, hidden_out


def char_rnn_forward(token_ids, hidden, packed):
    """Single step, matching CharRNN.forward: token_ids (B,), hidden (1, B, H)."""
    logits_seq, hidden_out = char_rnn_forward_seq(token_ids[None, :], hidden, packed)
    return logits_seq[0], hidden_out


# --------------------------------------------------------------------------
# Pure-JAX reference (PyTorch GRU math) for correctness checking.
# --------------------------------------------------------------------------
def char_rnn_ref_seq(tokens, hidden, p):
    H = p["emb"].shape[1]
    prec = lax.Precision.HIGHEST

    def step(h, tok):
        x = p["emb"][tok]                                        # (B, H)
        gi = jnp.dot(x, p["w_ih"].T, precision=prec) + p["b_ih"]
        gh = jnp.dot(h, p["w_hh"].T, precision=prec) + p["b_hh"]
        r = jax.nn.sigmoid(gi[:, :H] + gh[:, :H])
        z = jax.nn.sigmoid(gi[:, H:2 * H] + gh[:, H:2 * H])
        n = jnp.tanh(gi[:, 2 * H:] + r * gh[:, 2 * H:])
        h_new = (1.0 - z) * n + z * h
        logits = jnp.dot(h_new, p["w_dec"].T, precision=prec) + p["b_dec"]
        return h_new, logits

    h_final, logits = lax.scan(step, hidden[0], tokens)
    return logits, h_final[None]


# --------------------------------------------------------------------------
if __name__ == "__main__":
    key = jax.random.PRNGKey(0)
    k_param, k_tok = jax.random.split(key)

    input_size = 64      # vocab size
    hidden_size = 32
    output_size = 64
    batch_size = 2
    seq_len = 8

    raw_params = init_params(k_param, input_size, hidden_size, output_size)
    packed = pack_params(raw_params)                             # f32 weights (exact path)

    tokens = jax.random.randint(k_tok, (seq_len, batch_size), 0, input_size,
                                dtype=jnp.int32)
    hidden0 = jnp.zeros((1, batch_size, hidden_size), jnp.float32)   # init_hidden()

    ref_logits, ref_hidden = char_rnn_ref_seq(tokens, hidden0, raw_params)

    # Single-step forward (exactly CharRNN.forward semantics).
    logits1, hidden1 = char_rnn_forward(tokens[0], hidden0, packed)
    jax.block_until_ready((logits1, hidden1))
    assert logits1.shape == (batch_size, output_size)
    assert hidden1.shape == (1, batch_size, hidden_size)
    assert jnp.allclose(logits1, ref_logits[0], atol=1e-4, rtol=1e-4)

    # Whole-sequence decode: time loop fused inside one pallas_call.
    logits_seq, hidden_T = char_rnn_forward_seq(tokens, hidden0, packed)
    jax.block_until_ready((logits_seq, hidden_T))
    assert logits_seq.shape == (seq_len, batch_size, output_size)
    assert hidden_T.shape == (1, batch_size, hidden_size)
    assert jnp.allclose(logits_seq, ref_logits, atol=1e-4, rtol=1e-4)
    assert jnp.allclose(hidden_T, ref_hidden, atol=1e-4, rtol=1e-4)

    # Multi-chunk path with a ragged tail (T=5, Tc=4 -> 2 chunks, 3 padded steps).
    T2 = 5
    logits_5, hidden_5 = char_rnn_forward_seq(tokens[:T2], hidden0, packed, time_chunk=4)
    jax.block_until_ready((logits_5, hidden_5))
    ref_logits5, ref_hidden5 = char_rnn_ref_seq(tokens[:T2], hidden0, raw_params)
    assert jnp.allclose(logits_5, ref_logits5, atol=1e-4, rtol=1e-4)
    assert jnp.allclose(hidden_5, ref_hidden5, atol=1e-4, rtol=1e-4)

    # bf16-weight variant: halves resident-weight VMEM / DMA, f32 accumulation.
    packed_bf16 = pack_params(raw_params, weight_dtype=jnp.bfloat16)
    logits_bf16, hidden_bf16 = char_rnn_forward_seq(tokens, hidden0, packed_bf16)
    jax.block_until_ready((logits_bf16, hidden_bf16))
    assert jnp.allclose(logits_bf16, ref_logits, atol=5e-2, rtol=5e-2)
    assert jnp.allclose(hidden_bf16, ref_hidden, atol=5e-2, rtol=5e-2)

    print("KERNEL_OK")
</pallas_src>

<mosaic_0001>
module attributes {stable_mosaic.version = 11 : i64} {
  func.func @_char_gru_chunk_kernel(%arg0: i32, %arg1: memref<1x2xi32, #tpu.memory_space<smem>>, %arg2: memref<8x128xf32, #tpu.memory_space<vmem>>, %arg3: memref<128x384xf32, #tpu.memory_space<vmem>>, %arg4: memref<128x384xf32, #tpu.memory_space<vmem>>, %arg5: memref<1x128xf32, #tpu.memory_space<vmem>>, %arg6: memref<128x128xf32, #tpu.memory_space<vmem>>, %arg7: memref<1x128xf32, #tpu.memory_space<vmem>>, %arg8: memref<8x128xf32, #tpu.memory_space<vmem>>, %arg9: memref<8x128xf32, #tpu.memory_space<vmem>>, %arg10: memref<8x384xf32, #tpu.memory_space<vmem>>, %arg11: memref<8x128xf32, #tpu.memory_space<vmem>>) attributes {dimension_semantics = [#tpu.dimension_semantics<arbitrary>], iteration_bounds = array<i64: 1>, scalar_prefetch = 1 : i64, scratch_operands = 2 : i64, tpu.core_type = #tpu.core_type<tc>, window_params = [{pipeline_mode = #tpu.pipeline_mode<synchronous>, transform_indices = @transform_0, window_bounds = array<i64: 8, 128>}, {pipeline_mode = #tpu.pipeline_mode<synchronous>, transform_indices = @transform_1, window_bounds = array<i64: 128, 384>}, {pipeline_mode = #tpu.pipeline_mode<synchronous>, transform_indices = @transform_2, window_bounds = array<i64: 128, 384>}, {pipeline_mode = #tpu.pipeline_mode<synchronous>, transform_indices = @transform_3, window_bounds = array<i64: 1, 128>}, {pipeline_mode = #tpu.pipeline_mode<synchronous>, transform_indices = @transform_4, window_bounds = array<i64: 128, 128>}, {pipeline_mode = #tpu.pipeline_mode<synchronous>, transform_indices = @transform_5, window_bounds = array<i64: 1, 128>}, {transform_indices = @transform_6, window_bounds = array<i64: 8, 128>}, {transform_indices = @transform_7, window_bounds = array<i64: 8, 128>}]} {
    %c0_i32 = arith.constant 0 : i32
    %0 = arith.cmpi eq, %arg0, %c0_i32 : i32
    %1 = arith.extui %0 : i1 to i32
    %c0_i32_0 = arith.constant 0 : i32
    %2 = arith.cmpi ne, %1, %c0_i32_0 : i32
    scf.if %2 {
      %c0_35 = arith.constant 0 : index
      %c0_36 = arith.constant 0 : index
      %70 = vector.load %arg2[%c0_35, %c0_36] : memref<8x128xf32, #tpu.memory_space<vmem>>, vector<8x128xf32>
      %c0_37 = arith.constant 0 : index
      %c0_38 = arith.constant 0 : index
      %71 = vector.load %arg11[%c0_37, %c0_38] : memref<8x128xf32, #tpu.memory_space<vmem>>, vector<8x128xf32>
      tpu.vector_store %arg11[%c0_37, %c0_38], %70 {strides = array<i32>} : memref<8x128xf32, #tpu.memory_space<vmem>>, vector<8x128xf32>,
    } else {
    }
    %3 = tpu.iota {dimensions = array<i32: 0>} : vector<8x128xi32>
    %4 = tpu.iota {dimensions = array<i32: 1>} : vector<8x128xi32>
    %c-1_i32 = arith.constant -1 : i32
    %5 = vector.broadcast %c-1_i32 : i32 to vector<8x128xi32>
    %c0_i32_1 = arith.constant 0 : i32
    %6 = vector.broadcast %c0_i32_1 : i32 to vector<8x128xi32>
    %7 = arith.cmpi eq, %3, %6 : vector<8x128xi32>
    %c1_i32 = arith.constant 1 : i32
    %8 = arith.muli %arg0, %c1_i32 : i32
    %c0_i32_2 = arith.constant 0 : i32
    %9 = arith.addi %8, %c0_i32_2 : i32
    %10 = arith.index_cast %9 : i32 to index
    %c0 = arith.constant 0 : index
    %11 = memref.load %arg1[%10, %c0] : memref<1x2xi32, #tpu.memory_space<smem>>
    %12 = vector.broadcast %11 : i32 to vector<8x128xi32>
    %13 = arith.select %7, %12, %5 : vector<8x128xi1>, vector<8x128xi32>
    %c1_i32_3 = arith.constant 1 : i32
    %14 = vector.broadcast %c1_i32_3 : i32 to vector<8x128xi32>
    %15 = arith.cmpi eq, %3, %14 : vector<8x128xi32>
    %c1_i32_4 = arith.constant 1 : i32
    %16 = arith.muli %arg0, %c1_i32_4 : i32
    %c0_i32_5 = arith.constant 0 : i32
    %17 = arith.addi %16, %c0_i32_5 : i32
    %18 = arith.index_cast %17 : i32 to index
    %c1 = arith.constant 1 : index
    %19 = memref.load %arg1[%18, %c1] : memref<1x2xi32, #tpu.memory_space<smem>>
    %20 = vector.broadcast %19 : i32 to vector<8x128xi32>
    %21 = arith.select %15, %20, %13 : vector<8x128xi1>, vector<8x128xi32>
    %22 = arith.cmpi eq, %4, %21 : vector<8x128xi32>
    %23 = arith.extui %22 : vector<8x128xi1> to vector<8x128xi32>
    %24 = arith.sitofp %23 : vector<8x128xi32> to vector<8x128xf32>
    %c0_6 = arith.constant 0 : index
    %c0_7 = arith.constant 0 : index
    %25 = vector.load %arg3[%c0_6, %c0_7] : memref<128x384xf32, #tpu.memory_space<vmem>>, vector<128x384xf32>
    %cst = arith.constant dense<0.000000e+00> : vector<8x384xf32>
    %26 = tpu.matmul %24, %25, %cst {dimension_numbers = #tpu.dot_dimension_numbers<[1], [0], [0], [1], [0, 0, 1, 1], [], []>} : vector<8x128xf32>, vector<128x384xf32>, vector<8x384xf32> -> vector<8x384xf32>
    %c0_8 = arith.constant 0 : index
    %c0_9 = arith.constant 0 : index
    %27 = vector.load %arg10[%c0_8, %c0_9] : memref<8x384xf32, #tpu.memory_space<vmem>>, vector<8x384xf32>
    tpu.vector_store %arg10[%c0_8, %c0_9], %26 {strides = array<i32>} : memref<8x384xf32, #tpu.memory_space<vmem>>, vector<8x384xf32>,
    %c0_10 = arith.constant 0 : index
    %c0_11 = arith.constant 0 : index
    %28 = vector.load %arg4[%c0_10, %c0_11] : memref<128x384xf32, #tpu.memory_space<vmem>>, vector<128x384xf32>
    %c0_12 = arith.constant 0 : index
    %c0_13 = arith.constant 0 : index
    %29 = vector.load %arg5[%c0_12, %c0_13] : memref<1x128xf32, #tpu.memory_space<vmem>>, vector<1x128xf32>
    %c0_14 = arith.constant 0 : index
    %c0_15 = arith.constant 0 : index
    %30 = vector.load %arg11[%c0_14, %c0_15] : memref<8x128xf32, #tpu.memory_space<vmem>>, vector<8x128xf32>
    %c0_16 = arith.constant 0 : index
    %c0_17 = arith.constant 0 : index
    %31 = vector.load %arg10[%c0_16, %c0_17] : memref<8x384xf32, #tpu.memory_space<vmem>>, vector<8x384xf32>
    %cst_18 = arith.constant dense<0.000000e+00> : vector<8x384xf32>
    %32 = tpu.matmul %30, %28, %cst_18 {dimension_numbers = #tpu.dot_dimension_numbers<[1], [0], [0], [1], [0, 0, 1, 1], [], []>} : vector<8x128xf32>, vector<128x384xf32>, vector<8x384xf32> -> vector<8x384xf32>
    %33 = vector.extract_strided_slice %31 {offsets = [0, 0], sizes = [8, 128], strides = [1, 1]} : vector<8x384xf32> to vector<8x128xf32>
    %34 = vector.extract_strided_slice %32 {offsets = [0, 0], sizes = [8, 128], strides = [1, 1]} : vector<8x384xf32> to vector<8x128xf32>
    %35 = arith.addf %33, %34 : vector<8x128xf32>
    %36 = arith.negf %35 : vector<8x128xf32>
    %37 = math.exp %36 : vector<8x128xf32>
    %cst_19 = arith.constant 1.000000e+00 : f32
    %38 = vector.broadcast %cst_19 : f32 to vector<8x128xf32>
    %39 = arith.addf %38, %37 : vector<8x128xf32>
    %40 = arith.divf %38, %39 : vector<8x128xf32>
    %41 = vector.extract_strided_slice %31 {offsets = [0, 128], sizes = [8, 128], strides = [1, 1]} : vector<8x384xf32> to vector<8x128xf32>
    %42 = vector.extract_strided_slice %32 {offsets = [0, 128], sizes = [8, 128], strides = [1, 1]} : vector<8x384xf32> to vector<8x128xf32>
    %43 = arith.addf %41, %42 : vector<8x128xf32>
    %44 = arith.negf %43 : vector<8x128xf32>
    %45 = math.exp %44 : vector<8x128xf32>
    %cst_20 = arith.constant 1.000000e+00 : f32
    %46 = vector.broadcast %cst_20 : f32 to vector<8x128xf32>
    %47 = arith.addf %46, %45 : vector<8x128xf32>
    %48 = arith.divf %46, %47 : vector<8x128xf32>
    %49 = vector.extract_strided_slice %31 {offsets = [0, 256], sizes = [8, 128], strides = [1, 1]} : vector<8x384xf32> to vector<8x128xf32>
    %50 = vector.extract_strided_slice %32 {offsets = [0, 256], sizes = [8, 128], strides = [1, 1]} : vector<8x384xf32> to vector<8x128xf32>
    %51 = vector.broadcast %29 : vector<1x128xf32> to vector<8x128xf32>
    %52 = arith.addf %50, %51 : vector<8x128xf32>
    %53 = arith.mulf %40, %52 : vector<8x128xf32>
    %54 = arith.addf %49, %53 : vector<8x128xf32>
    %55 = math.tanh %54 : vector<8x128xf32>
    %cst_21 = arith.constant 1.000000e+00 : f32
    %56 = vector.broadcast %cst_21 : f32 to vector<8x128xf32>
    %57 = arith.subf %56, %48 : vector<8x128xf32>
    %58 = arith.mulf %57, %55 : vector<8x128xf32>
    %59 = arith.mulf %48, %30 : vector<8x128xf32>
    %60 = arith.addf %58, %59 : vector<8x128xf32>
    %c0_22 = arith.constant 0 : index
    %c0_23 = arith.constant 0 : index
    %61 = vector.load %arg9[%c0_22, %c0_23] : memref<8x128xf32, #tpu.memory_space<vmem>>, vector<8x128xf32>
    tpu.vector_store %arg9[%c0_22, %c0_23], %60 {strides = array<i32>} : memref<8x128xf32, #tpu.memory_space<vmem>>, vector<8x128xf32>,
    %c0_24 = arith.constant 0 : index
    %c0_25 = arith.constant 0 : index
    %62 = vector.load %arg11[%c0_24, %c0_25] : memref<8x128xf32, #tpu.memory_space<vmem>>, vector<8x128xf32>
    tpu.vector_store %arg11[%c0_24, %c0_25], %60 {strides = array<i32>} : memref<8x128xf32, #tpu.memory_space<vmem>>, vector<8x128xf32>,
    %c0_26 = arith.constant 0 : index
    %c0_27 = arith.constant 0 : index
    %63 = vector.load %arg9[%c0_26, %c0_27] : memref<8x128xf32, #tpu.memory_space<vmem>>, vector<8x128xf32>
    %c0_28 = arith.constant 0 : index
    %c0_29 = arith.constant 0 : index
    %64 = vector.load %arg6[%c0_28, %c0_29] : memref<128x128xf32, #tpu.memory_space<vmem>>, vector<128x128xf32>
    %cst_30 = arith.constant dense<0.000000e+00> : vector<8x128xf32>
    %65 = tpu.matmul %63, %64, %cst_30 {dimension_numbers = #tpu.dot_dimension_numbers<[1], [0], [0], [1], [0, 0, 1, 1], [], []>} : vector<8x128xf32>, vector<128x128xf32>, vector<8x128xf32> -> vector<8x128xf32>
    %c0_31 = arith.constant 0 : index
    %c0_32 = arith.constant 0 : index
    %66 = vector.load %arg7[%c0_31, %c0_32] : memref<1x128xf32, #tpu.memory_space<vmem>>, vector<1x128xf32>
    %67 = vector.broadcast %66 : vector<1x128xf32> to vector<8x128xf32>
    %68 = arith.addf %65, %67 : vector<8x128xf32>
    %c0_33 = arith.constant 0 : index
    %c0_34 = arith.constant 0 : index
    %69 = vector.load %arg8[%c0_33, %c0_34] : memref<8x128xf32, #tpu.memory_space<vmem>>, vector<8x128xf32>
    tpu.vector_store %arg8[%c0_33, %c0_34], %68 {strides = array<i32>} : memref<8x128xf32, #tpu.memory_space<vmem>>, vector<8x128xf32>,
    return
  }
  func.func @transform_0(%arg0: i32, %arg1: memref<1x2xi32, #tpu.memory_space<smem>>) -> (i32, i32) {
    %c0_i32 = arith.constant 0 : i32
    %c0_i32_0 = arith.constant 0 : i32
    %c0_i32_1 = arith.constant 0 : i32
    return %c0_i32, %c0_i32_0 : i32, i32
  }
  func.func @transform_1(%arg0: i32, %arg1: memref<1x2xi32, #tpu.memory_space<smem>>) -> (i32, i32) {
    %c0_i32 = arith.constant 0 : i32
    %c0_i32_0 = arith.constant 0 : i32
    %c0_i32_1 = arith.constant 0 : i32
    return %c0_i32, %c0_i32_0 : i32, i32
  }
  func.func @transform_2(%arg0: i32, %arg1: memref<1x2xi32, #tpu.memory_space<smem>>) -> (i32, i32) {
    %c0_i32 = arith.constant 0 : i32
    %c0_i32_0 = arith.constant 0 : i32
    %c0_i32_1 = arith.constant 0 : i32
    return %c0_i32, %c0_i32_0 : i32, i32
  }
  func.func @transform_3(%arg0: i32, %arg1: memref<1x2xi32, #tpu.memory_space<smem>>) -> (i32, i32) {
    %c0_i32 = arith.constant 0 : i32
    %c0_i32_0 = arith.constant 0 : i32
    %c0_i32_1 = arith.constant 0 : i32
    return %c0_i32, %c0_i32_0 : i32, i32
  }
  func.func @transform_4(%arg0: i32, %arg1: memref<1x2xi32, #tpu.memory_space<smem>>) -> (i32, i32) {
    %c0_i32 = arith.constant 0 : i32
    %c0_i32_0 = arith.constant 0 : i32
    %c0_i32_1 = arith.constant 0 : i32
    return %c0_i32, %c0_i32_0 : i32, i32
  }
  func.func @transform_5(%arg0: i32, %arg1: memref<1x2xi32, #tpu.memory_space<smem>>) -> (i32, i32) {
    %c0_i32 = arith.constant 0 : i32
    %c0_i32_0 = arith.constant 0 : i32
    %c0_i32_1 = arith.constant 0 : i32
    return %c0_i32, %c0_i32_0 : i32, i32
  }
  func.func @transform_6(%arg0: i32, %arg1: memref<1x2xi32, #tpu.memory_space<smem>>) -> (i32, i32) {
    %c0_i32 = arith.constant 0 : i32
    %c0_i32_0 = arith.constant 0 : i32
    return %arg0, %c0_i32 : i32, i32
  }
  func.func @transform_7(%arg0: i32, %arg1: memref<1x2xi32, #tpu.memory_space<smem>>) -> (i32, i32) {
    %c0_i32 = arith.constant 0 : i32
    %c0_i32_0 = arith.constant 0 : i32
    return %arg0, %c0_i32 : i32, i32
  }
}

</mosaic_0001>

<llo_original>
// kernel: tpu_custom_call.1
$region0: #{tpu_custom_call.1}
  #allocation0 [shape = 'u32[]', space=smem, size = 0x4, offset = 0x4, fixed_abs, tag = 'smem constant byte address 0x4 - core index']
  #allocation1 [shape = 'u32[144,128]{1,0:T(1,128)}', space=vmem, size = 0x12000, scoped, tag = 'internal scratch']
  #allocation2 [shape = 'f32[8,384]{1,0:T(8,128)}', space=vmem, size = 0x3000, scoped, tag = 'scratch operand']
  #allocation3 [shape = 'f32[8,128]{1,0:T(8,128)}', space=vmem, size = 0x1000, scoped, tag = 'scratch operand']
  #allocation4 [shape = 's32[1]{0}', space=sflag, size = 0x4, scoped, tag = 'scoped memory for tpu_custom_call.1']
  #allocation5 [shape = 'u8[512]{0}', space=smem, size = 0x200, scoped, tag = 'prefetched SMEM operand 0']
  %s0 = inlined_call_operand.hbm [shape: s32[1,2], index: 0, kind: input, shape index: {}]
  %s1 = inlined_call_operand.hbm [shape: f32[8,128], index: 1, kind: input, shape index: {}]
  %s2 = inlined_call_operand.hbm [shape: f32[128,384], index: 2, kind: input, shape index: {}]
  %s3 = inlined_call_operand.hbm [shape: f32[128,384], index: 3, kind: input, shape index: {}]
  %s4 = inlined_call_operand.vmem [shape: f32[1,128], index: 4, kind: input, shape index: {}]
  %s5 = inlined_call_operand.hbm [shape: f32[128,128], index: 5, kind: input, shape index: {}]
  %s6 = inlined_call_operand.vmem [shape: f32[1,128], index: 6, kind: input, shape index: {}]
  %s7 = inlined_call_operand.hbm [shape: f32[8,128], index: 7, kind: output, shape index: {0}]
  %s8 = inlined_call_operand.hbm [shape: f32[8,128], index: 8, kind: output, shape index: {1}]
  %9 = xla_tuple %s7, %s8
  %s10 = sld [smem:[#allocation0]]
  $region62: #{tpu_custom_call.1} parent=0
    _
  %s12 = ssub.s32 1, %s10
  %s13 = scalar_select 0, %s12, %s10
  %15 = dma.hbm_to_smem %s0, 16, [#allocation5], [#allocation4]
  %16 = dma.done [#allocation4], 16
  %17 = sfence
  $region1: #{tpu_custom_call.1} parent=0
    #allocation6 [shape = 'u8[4096]{0}', space=vmem, size = 0x1000, scoped, tag = 'input window, operand 1, single buffered']
    #allocation7 [shape = 's32[1]{0}', space=sflag, size = 0x4, scoped, tag = 'scoped memory for tpu_custom_call.1']
    #allocation8 [shape = 's32[1]{0}', space=sflag, size = 0x4, scoped, tag = 'scoped memory for tpu_custom_call.1']
    #allocation9 [shape = 'u8[196608]{0}', space=vmem, size = 0x30000, scoped, tag = 'input window, operand 2, single buffered']
    #allocation10 [shape = 's32[1]{0}', space=sflag, size = 0x4, scoped, tag = 'scoped memory for tpu_custom_call.1']
    #allocation11 [shape = 'u8[196608]{0}', space=vmem, size = 0x30000, scoped, tag = 'input window, operand 3, single buffered']
    #allocation12 [shape = 'u8[65536]{0}', space=vmem, size = 0x10000, scoped, tag = 'input window, operand 5, single buffered']
    #allocation13 [shape = 's32[1]{0}', space=sflag, size = 0x4, scoped, tag = 'scoped memory for tpu_custom_call.1']
    #allocation14 [shape = 'u8[4096]{0}', space=vmem, size = 0x1000, scoped, tag = 'output window, operand 0, single buffered']
    #allocation15 [shape = 'u8[4096]{0}', space=vmem, size = 0x1000, scoped, tag = 'output window, operand 1, single buffered']
    #allocation16 [shape = 's32[1]{0}', space=sflag, size = 0x4, scoped, tag = 'scoped memory for tpu_custom_call.1']
    %18 = vsyncpa [#allocation7], 0
    %19 = vsyncpa [#allocation10], 0
    %20 = vsyncpa [#allocation13], 0
    %21 = vsyncpa [#allocation8], 0
    %22 = vsyncpa [#allocation16], 0
    // Predicated region
    $region2: #{tpu_custom_call.1} parent=1 // pred_check
      _
    $region3: #{tpu_custom_call.1} parent=1 // pred_check_branch
      %24 = sbr.rel (0) target = $region5
    $region4: #{tpu_custom_call.1} parent=1 // pred_region
      %s26 = ssub.s32 128, 128
      %27 = vsyncadd [#allocation7], %s26
      %s29 = sshll.u32 [#allocation6], 4
      %s30 = int_to_ptr.vmem [resolvable:$true] %s29
      %32 = dma.hbm_to_vmem [thread:$0]  %s1, 128, %s30, [#allocation7]
    $region5: #{tpu_custom_call.1} parent=1 // pred_fallthru
      _
    // Predicated region
    $region6: #{tpu_custom_call.1} parent=1 // pred_check
      _
    $region7: #{tpu_custom_call.1} parent=1 // pred_check_branch
      %34 = sbr.rel (0) target = $region9
    $region8: #{tpu_custom_call.1} parent=1 // pred_region
      %s36 = ssub.s32 6144, 6144
      %37 = vsyncadd [#allocation10], %s36
      %s38 = sshll.u32 [#allocation9], 4
      %s39 = int_to_ptr.vmem [resolvable:$true] %s38
      %44 = dma.hbm_to_vmem [thread:$0]  %s2, 6144, %s39, [#allocation10], 384, 384, 24
    $region9: #{tpu_custom_call.1} parent=1 // pred_fallthru
      _
    // Predicated region
    $region10: #{tpu_custom_call.1} parent=1 // pred_check
      _
    $region11: #{tpu_custom_call.1} parent=1 // pred_check_branch
      %46 = sbr.rel (0) target = $region13
    $region12: #{tpu_custom_call.1} parent=1 // pred_region
      %s48 = ssub.s32 6144, 6144
      %49 = vsyncadd [#allocation10], %s48
      %s50 = sshll.u32 [#allocation11], 4
      %s51 = int_to_ptr.vmem [resolvable:$true] %s50
      %56 = dma.hbm_to_vmem [thread:$0]  %s3, 6144, %s51, [#allocation10], 384, 384, 24
    $region13: #{tpu_custom_call.1} parent=1 // pred_fallthru
      _
    // Predicated region
    $region14: #{tpu_custom_call.1} parent=1 // pred_check
      _
    $region15: #{tpu_custom_call.1} parent=1 // pred_check_branch
      %58 = sbr.rel (0) target = $region17
    $region16: #{tpu_custom_call.1} parent=1 // pred_region
      _
    $region17: #{tpu_custom_call.1} parent=1 // pred_fallthru
      _
    // Predicated region
    $region18: #{tpu_custom_call.1} parent=1 // pred_check
      _
    $region19: #{tpu_custom_call.1} parent=1 // pred_check_branch
      %60 = sbr.rel (0) target = $region21
    $region20: #{tpu_custom_call.1} parent=1 // pred_region
      %s62 = ssub.s32 2048, 2048
      %63 = vsyncadd [#allocation13], %s62
      %s64 = sshll.u32 [#allocation12], 4
      %s65 = int_to_ptr.vmem [resolvable:$true] %s64
      %70 = dma.hbm_to_vmem [thread:$0]  %s5, 2048, %s65, [#allocation13], 128, 128, 8
    $region21: #{tpu_custom_call.1} parent=1 // pred_fallthru
      _
    // Predicated region
    $region22: #{tpu_custom_call.1} parent=1 // pred_check
      _
    $region23: #{tpu_custom_call.1} parent=1 // pred_check_branch
      %72 = sbr.rel (0) target = $region25
    $region24: #{tpu_custom_call.1} parent=1 // pred_region
      _
    $region25: #{tpu_custom_call.1} parent=1 // pred_fallthru
      _
    // Predicated region
    $region26: #{tpu_custom_call.1} parent=1 // pred_check
      _
    $region27: #{tpu_custom_call.1} parent=1 // pred_check_branch
      %74 = sbr.rel (0) target = $region29
    $region28: #{tpu_custom_call.1} parent=1 // pred_region
      %75 = dma.done [#allocation7], 128
    $region29: #{tpu_custom_call.1} parent=1 // pred_fallthru
      _
    // Predicated region
    $region30: #{tpu_custom_call.1} parent=1 // pred_check
      _
    $region31: #{tpu_custom_call.1} parent=1 // pred_check_branch
      %77 = sbr.rel (0) target = $region33
    $region32: #{tpu_custom_call.1} parent=1 // pred_region
      %78 = dma.done [#allocation10], 6144
    $region33: #{tpu_custom_call.1} parent=1 // pred_fallthru
      _
    // Predicated region
    $region34: #{tpu_custom_call.1} parent=1 // pred_check
      _
    $region35: #{tpu_custom_call.1} parent=1 // pred_check_branch
      %80 = sbr.rel (0) target = $region37
    $region36: #{tpu_custom_call.1} parent=1 // pred_region
      %81 = dma.done [#allocation10], 6144
    $region37: #{tpu_custom_call.1} parent=1 // pred_fallthru
      _
    // Predicated region
    $region38: #{tpu_custom_call.1} parent=1 // pred_check
      _
    $region39: #{tpu_custom_call.1} parent=1 // pred_check_branch
      %83 = sbr.rel (0) target = $region41
    $region40: #{tpu_custom_call.1} parent=1 // pred_region
      %84 = dma.done [#allocation13], 2048
    $region41: #{tpu_custom_call.1} parent=1 // pred_fallthru
      _
    %p85 = scmp.eq.s32.totalorder 0, 0
    // Predicated region
    $region42: #{tpu_custom_call.1} parent=1 // pred_check
      %p86 = pneg %p85
    $region43: #{tpu_custom_call.1} parent=1 // pred_check_branch
      %88 = sbr.rel (%p86) target = $region45
    $region44: #{tpu_custom_call.1} parent=1 // pred_region
      %v89 = vld [vmem:[#allocation6] sm:$0xff]
      %90 = vst [vmem:[#allocation3] sm:$0xff] %v89
    $region45: #{tpu_custom_call.1} parent=1 // pred_fallthru
      _
    %v91 = vlaneseq
    %v92 = vshrl.u32 %v91, 7
    %v93 = vlaneseq
    %v94 = vand.u32 %v93, 127
    %vm95 = vcmp.eq.s32.totalorder %v92, 0
    %s96 = smul.u32 0, 128
    %s97 = sld [smem:[#allocation5 + %s96]]
    %v98 = vstv %s97
    %v99 = vsel %vm95, %v98, 4294967295
    %vm100 = vcmp.eq.s32.totalorder %v92, 1
    %s101 = sadd.s32 %s96, 1
    %s102 = sld [smem:[#allocation5 + %s101]]
    %v103 = vstv %s102
    %v104 = vsel %vm100, %v103, %v99
    %vm105 = vcmp.eq.s32.totalorder %v94, %v104
    %v106 = vsel %vm105, 1, 0
    %v107 = vcvt.s32.f32 %v106
    %v108 = vld [vmem:[#allocation9] sm:$0xff]
    %v109 = vld [vmem:[#allocation9 + $0x8] sm:$0xff]
    %v110 = vld [vmem:[#allocation9 + $0x10] sm:$0xff]
    %v111 = vld [vmem:[#allocation9 + $0x18] sm:$0xff]
    %v112 = vld [vmem:[#allocation9 + $0x20] sm:$0xff]
    %v113 = vld [vmem:[#allocation9 + $0x28] sm:$0xff]
    %v114 = vld [vmem:[#allocation9 + $0x30] sm:$0xff]
    %v115 = vld [vmem:[#allocation9 + $0x38] sm:$0xff]
    %v116 = vld [vmem:[#allocation9 + $0x40] sm:$0xff]
    %v117 = vld [vmem:[#allocation9 + $0x48] sm:$0xff]
    %v118 = vld [vmem:[#allocation9 + $0x50] sm:$0xff]
    %v119 = vld [vmem:[#allocation9 + $0x58] sm:$0xff]
    %v120 = vld [vmem:[#allocation9 + $0x60] sm:$0xff]
    %v121 = vld [vmem:[#allocation9 + $0x68] sm:$0xff]
    %v122 = vld [vmem:[#allocation9 + $0x70] sm:$0xff]
    %v123 = vld [vmem:[#allocation9 + $0x78] sm:$0xff]
    %v124 = vld [vmem:[#allocation9 + $0x80] sm:$0xff]
    %v125 = vld [vmem:[#allocation9 + $0x88] sm:$0xff]
    %v126 = vld [vmem:[#allocation9 + $0x90] sm:$0xff]
    %v127 = vld [vmem:[#allocation9 + $0x98] sm:$0xff]
    %v128 = vld [vmem:[#allocation9 + $0xa0] sm:$0xff]
    %v129 = vld [vmem:[#allocation9 + $0xa8] sm:$0xff]
    %v130 = vld [vmem:[#allocation9 + $0xb0] sm:$0xff]
    %v131 = vld [vmem:[#allocation9 + $0xb8] sm:$0xff]
    %v132 = vld [vmem:[#allocation9 + $0xc0] sm:$0xff]
    %v133 = vld [vmem:[#allocation9 + $0xc8] sm:$0xff]
    %v134 = vld [vmem:[#allocation9 + $0xd0] sm:$0xff]
    %v135 = vld [vmem:[#allocation9 + $0xd8] sm:$0xff]
    %v136 = vld [vmem:[#allocation9 + $0xe0] sm:$0xff]
    %v137 = vld [vmem:[#allocation9 + $0xe8] sm:$0xff]
    %v138 = vld [vmem:[#allocation9 + $0xf0] sm:$0xff]
    %v139 = vld [vmem:[#allocation9 + $0xf8] sm:$0xff]
    %v140 = vld [vmem:[#allocation9 + $0x100] sm:$0xff]
    %v141 = vld [vmem:[#allocation9 + $0x108] sm:$0xff]
    %v142 = vld [vmem:[#allocation9 + $0x110] sm:$0xff]
    %v143 = vld [vmem:[#allocation9 + $0x118] sm:$0xff]
    %v144 = vld [vmem:[#allocation9 + $0x120] sm:$0xff]
    %v145 = vld [vmem:[#allocation9 + $0x128] sm:$0xff]
    %v146 = vld [vmem:[#allocation9 + $0x130] sm:$0xff]
    %v147 = vld [vmem:[#allocation9 + $0x138] sm:$0xff]
    %v148 = vld [vmem:[#allocation9 + $0x140] sm:$0xff]
    %v149 = vld [vmem:[#allocation9 + $0x148] sm:$0xff]
    %v150 = vld [vmem:[#allocation9 + $0x150] sm:$0xff]
    %v151 = vld [vmem:[#allocation9 + $0x158] sm:$0xff]
    %v152 = vld [vmem:[#allocation9 + $0x160] sm:$0xff]
    %v153 = vld [vmem:[#allocation9 + $0x168] sm:$0xff]
    %v154 = vld [vmem:[#allocation9 + $0x170] sm:$0xff]
    %v155 = vld [vmem:[#allocation9 + $0x178] sm:$0xff]
    %156 = vmatprep.subr.mxu0 %v109
    %157 = vmatpush1.msra.mxu0 %v108
    %158 = vmatprep.subr.mxu0 %v112
    %159 = vmatpush1.msra.mxu0 %v111
    %160 = vmatprep.subr.mxu0 %v115
    %161 = vmatpush1.msra.mxu0 %v114
    %162 = vmatprep.subr.mxu0 %v118
    %163 = vmatpush1.msra.mxu0 %v117
    %164 = vmatprep.subr.mxu0 %v121
    %165 = vmatpush1.msra.mxu0 %v120
    %166 = vmatprep.subr.mxu0 %v124
    %167 = vmatpush1.msra.mxu0 %v123
    %168 = vmatprep.subr.mxu0 %v127
    %169 = vmatpush1.msra.mxu0 %v126
    %170 = vmatprep.subr.mxu0 %v130
    %171 = vmatpush1.msra.mxu0 %v129
    %172 = vmatprep.subr.mxu0 %v133
    %173 = vmatpush1.msra.mxu0 %v132
    %174 = vmatprep.subr.mxu0 %v136
    %175 = vmatpush1.msra.mxu0 %v135
    %176 = vmatprep.subr.mxu0 %v139
    %177 = vmatpush1.msra.mxu0 %v138
    %178 = vmatprep.subr.mxu0 %v142
    %179 = vmatpush1.msra.mxu0 %v141
    %180 = vmatprep.subr.mxu0 %v145
    %181 = vmatpush1.msra.mxu0 %v144
    %182 = vmatprep.subr.mxu0 %v148
    %183 = vmatpush1.msra.mxu0 %v147
    %184 = vmatprep.subr.mxu0 %v151
    %185 = vmatpush1.msra.mxu0 %v150
    %186 = vmatprep.subr.mxu0 %v154
    %187 = vmatpush1.msra.mxu0 %v153
    %188 = vmatprep.subr.mxu0 0.0
    %189 = vmatpush1.msra.mxu0 0.0
    %190 = vmatprep.subr.mxu0 0.0
    %191 = vmatpush1.msra.mxu0 0.0
    %192 = vmatprep.subr.mxu0 0.0
    %193 = vmatpush1.msra.mxu0 0.0
    %194 = vmatprep.subr.mxu0 0.0
    %195 = vmatpush1.msra.mxu0 0.0
    %196 = vmatprep.subr.mxu0 0.0
    %197 = vmatpush1.msra.mxu0 0.0
    %198 = vmatprep.subr.mxu0 0.0
    %199 = vmatpush1.msra.mxu0 0.0
    %200 = vmatprep.subr.mxu0 0.0
    %201 = vmatpush1.msra.mxu0 0.0
    %202 = vmatprep.subr.mxu0 0.0
    %203 = vmatpush1.msra.mxu0 0.0
    %204 = vmatprep.subr.mxu0 0.0
    %205 = vmatpush1.msra.mxu0 0.0
    %206 = vmatprep.subr.mxu0 0.0
    %207 = vmatpush1.msra.mxu0 0.0
    %208 = vmatprep.subr.mxu0 0.0
    %209 = vmatpush1.msra.mxu0 0.0
    %210 = vmatprep.subr.mxu0 0.0
    %211 = vmatpush1.msra.mxu0 0.0
    %212 = vmatprep.subr.mxu0 0.0
    %213 = vmatpush1.msra.mxu0 0.0
    %214 = vmatprep.subr.mxu0 0.0
    %215 = vmatpush1.msra.mxu0 0.0
    %216 = vmatprep.subr.mxu0 0.0
    %217 = vmatpush1.msra.mxu0 0.0
    %218 = vmatprep.subr.mxu0 0.0
    %219 = vmatpush1.msra.mxu0 0.0
    %220 = vmatprep.mubr.f32.mxu0 0.0
    %221 = vmatmul.mubr.f32.gmra.mrb[0].mxu0 %v107
    %v222 = vpop.f32.mrb[0].mxu0
    %v223 = vadd.f32 0.0, %v222
    %v224 = vpop.f32.mrb[0].mxu0
    %v225 = vadd.f32 0.0, %v224
    %226 = vdwg.mxu0
    %227 = vmatprep.subr.mxu0 0.0
    %228 = vmatpush1.msra.mxu0 %v110
    %229 = vmatprep.subr.mxu0 0.0
    %230 = vmatpush1.msra.mxu0 %v113
    %231 = vmatprep.subr.mxu0 0.0
    %232 = vmatpush1.msra.mxu0 %v116
    %233 = vmatprep.subr.mxu0 0.0
    %234 = vmatpush1.msra.mxu0 %v119
    %235 = vmatprep.subr.mxu0 0.0
    %236 = vmatpush1.msra.mxu0 %v122
    %237 = vmatprep.subr.mxu0 0.0
    %238 = vmatpush1.msra.mxu0 %v125
    %239 = vmatprep.subr.mxu0 0.0
    %240 = vmatpush1.msra.mxu0 %v128
    %241 = vmatprep.subr.mxu0 0.0
    %242 = vmatpush1.msra.mxu0 %v131
    %243 = vmatprep.subr.mxu0 0.0
    %244 = vmatpush1.msra.mxu0 %v134
    %245 = vmatprep.subr.mxu0 0.0
    %246 = vmatpush1.msra.mxu0 %v137
    %247 = vmatprep.subr.mxu0 0.0
    %248 = vmatpush1.msra.mxu0 %v140
    %249 = vmatprep.subr.mxu0 0.0
    %250 = vmatpush1.msra.mxu0 %v143
    %251 = vmatprep.subr.mxu0 0.0
    %252 = vmatpush1.msra.mxu0 %v146
    %253 = vmatprep.subr.mxu0 0.0
    %254 = vmatpush1.msra.mxu0 %v149
    %255 = vmatprep.subr.mxu0 0.0
    %256 = vmatpush1.msra.mxu0 %v152
    %257 = vmatprep.subr.mxu0 0.0
    %258 = vmatpush1.msra.mxu0 %v155
    %259 = vmatprep.subr.mxu0 0.0
    %260 = vmatpush1.msra.mxu0 0.0
    %261 = vmatprep.subr.mxu0 0.0
    %262 = vmatpush1.msra.mxu0 0.0
    %263 = vmatprep.subr.mxu0 0.0
    %264 = vmatpush1.msra.mxu0 0.0
    %265 = vmatprep.subr.mxu0 0.0
    %266 = vmatpush1.msra.mxu0 0.0
    %267 = vmatprep.subr.mxu0 0.0
    %268 = vmatpush1.msra.mxu0 0.0
    %269 = vmatprep.subr.mxu0 0.0
    %270 = vmatpush1.msra.mxu0 0.0
    %271 = vmatprep.subr.mxu0 0.0
    %272 = vmatpush1.msra.mxu0 0.0
    %273 = vmatprep.subr.mxu0 0.0
    %274 = vmatpush1.msra.mxu0 0.0
    %275 = vmatprep.subr.mxu0 0.0
    %276 = vmatpush1.msra.mxu0 0.0
    %277 = vmatprep.subr.mxu0 0.0
    %278 = vmatpush1.msra.mxu0 0.0
    %279 = vmatprep.subr.mxu0 0.0
    %280 = vmatpush1.msra.mxu0 0.0
    %281 = vmatprep.subr.mxu0 0.0
    %282 = vmatpush1.msra.mxu0 0.0
    %283 = vmatprep.subr.mxu0 0.0
    %284 = vmatpush1.msra.mxu0 0.0
    %285 = vmatprep.subr.mxu0 0.0
    %286 = vmatpush1.msra.mxu0 0.0
    %287 = vmatprep.subr.mxu0 0.0
    %288 = vmatpush1.msra.mxu0 0.0
    %289 = vmatprep.subr.mxu0 0.0
    %290 = vmatpush1.msra.mxu0 0.0
    %291 = vmatprep.mubr.f32.mxu0 0.0
    %292 = vmatmul.mubr.f32.gmra.mrb[0].mxu0 %v107
    %v293 = vpop.f32.mrb[0].mxu0
    %v294 = vadd.f32 0.0, %v293
    %v295 = vpop.f32.mrb[0].mxu0
    %296 = vdwg.mxu0
    %297 = vst [vmem:[#allocation2] sm:$0xff] %v223
    %298 = vst [vmem:[#allocation2 + $0x8] sm:$0xff] %v225
    %299 = vst [vmem:[#allocation2 + $0x10] sm:$0xff] %v294
    %v300 = vld [vmem:[#allocation11] sm:$0xff]
    %v301 = vld [vmem:[#allocation11 + $0x8] sm:$0xff]
    %v302 = vld [vmem:[#allocation11 + $0x10] sm:$0xff]
    %v303 = vld [vmem:[#allocation11 + $0x18] sm:$0xff]
    %v304 = vld [vmem:[#allocation11 + $0x20] sm:$0xff]
    %v305 = vld [vmem:[#allocation11 + $0x28] sm:$0xff]
    %v306 = vld [vmem:[#allocation11 + $0x30] sm:$0xff]
    %v307 = vld [vmem:[#allocation11 + $0x38] sm:$0xff]
    %v308 = vld [vmem:[#allocation11 + $0x40] sm:$0xff]
    %v309 = vld [vmem:[#allocation11 + $0x48] sm:$0xff]
    %v310 = vld [vmem:[#allocation11 + $0x50] sm:$0xff]
    %v311 = vld [vmem:[#allocation11 + $0x58] sm:$0xff]
    %v312 = vld [vmem:[#allocation11 + $0x60] sm:$0xff]
    %v313 = vld [vmem:[#allocation11 + $0x68] sm:$0xff]
    %v314 = vld [vmem:[#allocation11 + $0x70] sm:$0xff]
    %v315 = vld [vmem:[#allocation11 + $0x78] sm:$0xff]
    %v316 = vld [vmem:[#allocation11 + $0x80] sm:$0xff]
    %v317 = vld [vmem:[#allocation11 + $0x88] sm:$0xff]
    %v318 = vld [vmem:[#allocation11 + $0x90] sm:$0xff]
    %v319 = vld [vmem:[#allocation11 + $0x98] sm:$0xff]
    %v320 = vld [vmem:[#allocation11 + $0xa0] sm:$0xff]
    %v321 = vld [vmem:[#allocation11 + $0xa8] sm:$0xff]
    %v322 = vld [vmem:[#allocation11 + $0xb0] sm:$0xff]
    %v323 = vld [vmem:[#allocation11 + $0xb8] sm:$0xff]
    %v324 = vld [vmem:[#allocation11 + $0xc0] sm:$0xff]
    %v325 = vld [vmem:[#allocation11 + $0xc8] sm:$0xff]
    %v326 = vld [vmem:[#allocation11 + $0xd0] sm:$0xff]
    %v327 = vld [vmem:[#allocation11 + $0xd8] sm:$0xff]
    %v328 = vld [vmem:[#allocation11 + $0xe0] sm:$0xff]
    %v329 = vld [vmem:[#allocation11 + $0xe8] sm:$0xff]
    %v330 = vld [vmem:[#allocation11 + $0xf0] sm:$0xff]
    %v331 = vld [vmem:[#allocation11 + $0xf8] sm:$0xff]
    %v332 = vld [vmem:[#allocation11 + $0x100] sm:$0xff]
    %v333 = vld [vmem:[#allocation11 + $0x108] sm:$0xff]
    %v334 = vld [vmem:[#allocation11 + $0x110] sm:$0xff]
    %v335 = vld [vmem:[#allocation11 + $0x118] sm:$0xff]
    %v336 = vld [vmem:[#allocation11 + $0x120] sm:$0xff]
    %v337 = vld [vmem:[#allocation11 + $0x128] sm:$0xff]
    %v338 = vld [vmem:[#allocation11 + $0x130] sm:$0xff]
    %v339 = vld [vmem:[#allocation11 + $0x138] sm:$0xff]
    %v340 = vld [vmem:[#allocation11 + $0x140] sm:$0xff]
    %v341 = vld [vmem:[#allocation11 + $0x148] sm:$0xff]
    %v342 = vld [vmem:[#allocation11 + $0x150] sm:$0xff]
    %v343 = vld [vmem:[#allocation11 + $0x158] sm:$0xff]
    %v344 = vld [vmem:[#allocation11 + $0x160] sm:$0xff]
    %v345 = vld [vmem:[#allocation11 + $0x168] sm:$0xff]
    %v346 = vld [vmem:[#allocation11 + $0x170] sm:$0xff]
    %v347 = vld [vmem:[#allocation11 + $0x178] sm:$0xff]
    %v348 = vld [vmem:[%s4] sm:$0x1]
    %v349 = vld [vmem:[#allocation3] sm:$0xff]
    %v350 = vld [vmem:[#allocation2] sm:$0xff]
    %v351 = vld [vmem:[#allocation2 + $0x8] sm:$0xff]
    %v352 = vld [vmem:[#allocation2 + $0x10] sm:$0xff]
    %353 = vmatprep.subr.mxu0 %v301
    %354 = vmatpush1.msra.mxu0 %v300
    %355 = vmatprep.subr.mxu0 %v304
    %356 = vmatpush1.msra.mxu0 %v303
    %357 = vmatprep.subr.mxu0 %v307
    %358 = vmatpush1.msra.mxu0 %v306
    %359 = vmatprep.subr.mxu0 %v310
    %360 = vmatpush1.msra.mxu0 %v309
    %361 = vmatprep.subr.mxu0 %v313
    %362 = vmatpush1.msra.mxu0 %v312
    %363 = vmatprep.subr.mxu0 %v316
    %364 = vmatpush1.msra.mxu0 %v315
    %365 = vmatprep.subr.mxu0 %v319
    %366 = vmatpush1.msra.mxu0 %v318
    %367 = vmatprep.subr.mxu0 %v322
    %368 = vmatpush1.msra.mxu0 %v321
    %369 = vmatprep.subr.mxu0 %v325
    %370 = vmatpush1.msra.mxu0 %v324
    %371 = vmatprep.subr.mxu0 %v328
    %372 = vmatpush1.msra.mxu0 %v327
    %373 = vmatprep.subr.mxu0 %v331
    %374 = vmatpush1.msra.mxu0 %v330
    %375 = vmatprep.subr.mxu0 %v334
    %376 = vmatpush1.msra.mxu0 %v333
    %377 = vmatprep.subr.mxu0 %v337
    %378 = vmatpush1.msra.mxu0 %v336
    %379 = vmatprep.subr.mxu0 %v340
    %380 = vmatpush1.msra.mxu0 %v339
    %381 = vmatprep.subr.mxu0 %v343
    %382 = vmatpush1.msra.mxu0 %v342
    %383 = vmatprep.subr.mxu0 %v346
    %384 = vmatpush1.msra.mxu0 %v345
    %385 = vmatprep.subr.mxu0 0.0
    %386 = vmatpush1.msra.mxu0 0.0
    %387 = vmatprep.subr.mxu0 0.0
    %388 = vmatpush1.msra.mxu0 0.0
    %389 = vmatprep.subr.mxu0 0.0
    %390 = vmatpush1.msra.mxu0 0.0
    %391 = vmatprep.subr.mxu0 0.0
    %392 = vmatpush1.msra.mxu0 0.0
    %393 = vmatprep.subr.mxu0 0.0
    %394 = vmatpush1.msra.mxu0 0.0
    %395 = vmatprep.subr.mxu0 0.0
    %396 = vmatpush1.msra.mxu0 0.0
    %397 = vmatprep.subr.mxu0 0.0
    %398 = vmatpush1.msra.mxu0 0.0
    %399 = vmatprep.subr.mxu0 0.0
    %400 = vmatpush1.msra.mxu0 0.0
    %401 = vmatprep.subr.mxu0 0.0
    %402 = vmatpush1.msra.mxu0 0.0
    %403 = vmatprep.subr.mxu0 0.0
    %404 = vmatpush1.msra.mxu0 0.0
    %405 = vmatprep.subr.mxu0 0.0
    %406 = vmatpush1.msra.mxu0 0.0
    %407 = vmatprep.subr.mxu0 0.0
    %408 = vmatpush1.msra.mxu0 0.0
    %409 = vmatprep.subr.mxu0 0.0
    %410 = vmatpush1.msra.mxu0 0.0
    %411 = vmatprep.subr.mxu0 0.0
    %412 = vmatpush1.msra.mxu0 0.0
    %413 = vmatprep.subr.mxu0 0.0
    %414 = vmatpush1.msra.mxu0 0.0
    %415 = vmatprep.subr.mxu0 0.0
    %416 = vmatpush1.msra.mxu0 0.0
    %417 = vmatprep.mubr.f32.mxu0 0.0
    %418 = vmatmul.mubr.f32.gmra.mrb[0].mxu0 %v349
    %v419 = vpop.f32.mrb[0].mxu0
    %v420 = vadd.f32 0.0, %v419
    %v421 = vpop.f32.mrb[0].mxu0
    %v422 = vadd.f32 0.0, %v421
    %423 = vdwg.mxu0
    %424 = vmatprep.subr.mxu0 0.0
    %425 = vmatpush1.msra.mxu0 %v302
    %426 = vmatprep.subr.mxu0 0.0
    %427 = vmatpush1.msra.mxu0 %v305
    %428 = vmatprep.subr.mxu0 0.0
    %429 = vmatpush1.msra.mxu0 %v308
    %430 = vmatprep.subr.mxu0 0.0
    %431 = vmatpush1.msra.mxu0 %v311
    %432 = vmatprep.subr.mxu0 0.0
    %433 = vmatpush1.msra.mxu0 %v314
    %434 = vmatprep.subr.mxu0 0.0
    %435 = vmatpush1.msra.mxu0 %v317
    %436 = vmatprep.subr.mxu0 0.0
    %437 = vmatpush1.msra.mxu0 %v320
    %438 = vmatprep.subr.mxu0 0.0
    %439 = vmatpush1.msra.mxu0 %v323
    %440 = vmatprep.subr.mxu0 0.0
    %441 = vmatpush1.msra.mxu0 %v326
    %442 = vmatprep.subr.mxu0 0.0
    %443 = vmatpush1.msra.mxu0 %v329
    %444 = vmatprep.subr.mxu0 0.0
    %445 = vmatpush1.msra.mxu0 %v332
    %446 = vmatprep.subr.mxu0 0.0
    %447 = vmatpush1.msra.mxu0 %v335
    %448 = vmatprep.subr.mxu0 0.0
    %449 = vmatpush1.msra.mxu0 %v338
    %450 = vmatprep.subr.mxu0 0.0
    %451 = vmatpush1.msra.mxu0 %v341
    %452 = vmatprep.subr.mxu0 0.0
    %453 = vmatpush1.msra.mxu0 %v344
    %454 = vmatprep.subr.mxu0 0.0
    %455 = vmatpush1.msra.mxu0 %v347
    %456 = vmatprep.subr.mxu0 0.0
    %457 = vmatpush1.msra.mxu0 0.0
    %458 = vmatprep.subr.mxu0 0.0
    %459 = vmatpush1.msra.mxu0 0.0
    %460 = vmatprep.subr.mxu0 0.0
    %461 = vmatpush1.msra.mxu0 0.0
    %462 = vmatprep.subr.mxu0 0.0
    %463 = vmatpush1.msra.mxu0 0.0
    %464 = vmatprep.subr.mxu0 0.0
    %465 = vmatpush1.msra.mxu0 0.0
    %466 = vmatprep.subr.mxu0 0.0
    %467 = vmatpush1.msra.mxu0 0.0
    %468 = vmatprep.subr.mxu0 0.0
    %469 = vmatpush1.msra.mxu0 0.0
    %470 = vmatprep.subr.mxu0 0.0
    %471 = vmatpush1.msra.mxu0 0.0
    %472 = vmatprep.subr.mxu0 0.0
    %473 = vmatpush1.msra.mxu0 0.0
    %474 = vmatprep.subr.mxu0 0.0
    %475 = vmatpush1.msra.mxu0 0.0
    %476 = vmatprep.subr.mxu0 0.0
    %477 = vmatpush1.msra.mxu0 0.0
    %478 = vmatprep.subr.mxu0 0.0
    %479 = vmatpush1.msra.mxu0 0.0
    %480 = vmatprep.subr.mxu0 0.0
    %481 = vmatpush1.msra.mxu0 0.0
    %482 = vmatprep.subr.mxu0 0.0
    %483 = vmatpush1.msra.mxu0 0.0
    %484 = vmatprep.subr.mxu0 0.0
    %485 = vmatpush1.msra.mxu0 0.0
    %486 = vmatprep.subr.mxu0 0.0
    %487 = vmatpush1.msra.mxu0 0.0
    %488 = vmatprep.mubr.f32.mxu0 0.0
    %489 = vmatmul.mubr.f32.gmra.mrb[0].mxu0 %v349
    %v490 = vpop.f32.mrb[0].mxu0
    %v491 = vadd.f32 0.0, %v490
    %v492 = vpop.f32.mrb[0].mxu0
    %493 = vdwg.mxu0
    %v494 = vadd.f32 %v350, %v420
    %v495 = vxor.u32 %v494, 2147483648
    %v496 = vmul.f32 %v495, 1.442695
    %v497 = vpow.pop %v496
    %v498 = vadd.f32 %v497, 1.0
    %v499 = vrcp.pop %v498
    %v500 = vmul.f32 1.0, %v499
    %v501 = vadd.f32 %v351, %v422
    %v502 = vxor.u32 %v501, 2147483648
    %v503 = vmul.f32 %v502, 1.442695
    %v504 = vpow.pop %v503
    %v505 = vadd.f32 %v504, 1.0
    %v506 = vrcp.pop %v505
    %v507 = vmul.f32 1.0, %v506
    %v509 = vlaneseq
    %v510 = vshrl.u32 %v509, 7
    %v511 = vsub.s32 0, %v510
    %v512 = vrot.slane %v348, %v511
    %v514 = vadd.f32 %v491, %v512
    %v515 = vmul.f32 %v500, %v514
    %v516 = vadd.f32 %v352, %v515
    %v517 = vtanh.pop %v516
    %v518 = vsub.f32 1.0, %v507
    %v519 = vmul.f32 %v518, %v517
    %v520 = vmul.f32 %v507, %v349
    %v521 = vadd.f32 %v519, %v520
    %522 = vst [vmem:[#allocation15] sm:$0xff] %v521
    %523 = vst [vmem:[#allocation3] sm:$0xff] %v521
    %v524 = vld [vmem:[#allocation15] sm:$0xff]
    %v525 = vld [vmem:[#allocation12] sm:$0xff]
    %v526 = vld [vmem:[#allocation12 + $0x8] sm:$0xff]
    %v527 = vld [vmem:[#allocation12 + $0x10] sm:$0xff]
    %v528 = vld [vmem:[#allocation12 + $0x18] sm:$0xff]
    %v529 = vld [vmem:[#allocation12 + $0x20] sm:$0xff]
    %v530 = vld [vmem:[#allocation12 + $0x28] sm:$0xff]
    %v531 = vld [vmem:[#allocation12 + $0x30] sm:$0xff]
    %v532 = vld [vmem:[#allocation12 + $0x38] sm:$0xff]
    %v533 = vld [vmem:[#allocation12 + $0x40] sm:$0xff]
    %v534 = vld [vmem:[#allocation12 + $0x48] sm:$0xff]
    %v535 = vld [vmem:[#allocation12 + $0x50] sm:$0xff]
    %v536 = vld [vmem:[#allocation12 + $0x58] sm:$0xff]
    %v537 = vld [vmem:[#allocation12 + $0x60] sm:$0xff]
    %v538 = vld [vmem:[#allocation12 + $0x68] sm:$0xff]
    %v539 = vld [vmem:[#allocation12 + $0x70] sm:$0xff]
    %v540 = vld [vmem:[#allocation12 + $0x78] sm:$0xff]
    %v541 = vld [vmem:[%s6] sm:$0x1]
    %v543 = vlaneseq
    %v544 = vshrl.u32 %v543, 7
    %v545 = vsub.s32 0, %v544
    %v546 = vrot.slane %v541, %v545
    %548 = vmatprep.subr.mxu0 0.0
    %549 = vmatpush1.msra.mxu0 %v525
    %550 = vmatprep.subr.mxu0 0.0
    %551 = vmatpush1.msra.mxu0 %v526
    %552 = vmatprep.subr.mxu0 0.0
    %553 = vmatpush1.msra.mxu0 %v527
    %554 = vmatprep.subr.mxu0 0.0
    %555 = vmatpush1.msra.mxu0 %v528
    %556 = vmatprep.subr.mxu0 0.0
    %557 = vmatpush1.msra.mxu0 %v529
    %558 = vmatprep.subr.mxu0 0.0
    %559 = vmatpush1.msra.mxu0 %v530
    %560 = vmatprep.subr.mxu0 0.0
    %561 = vmatpush1.msra.mxu0 %v531
    %562 = vmatprep.subr.mxu0 0.0
    %563 = vmatpush1.msra.mxu0 %v532
    %564 = vmatprep.subr.mxu0 0.0
    %565 = vmatpush1.msra.mxu0 %v533
    %566 = vmatprep.subr.mxu0 0.0
    %567 = vmatpush1.msra.mxu0 %v534
    %568 = vmatprep.subr.mxu0 0.0
    %569 = vmatpush1.msra.mxu0 %v535
    %570 = vmatprep.subr.mxu0 0.0
    %571 = vmatpush1.msra.mxu0 %v536
    %572 = vmatprep.subr.mxu0 0.0
    %573 = vmatpush1.msra.mxu0 %v537
    %574 = vmatprep.subr.mxu0 0.0
    %575 = vmatpush1.msra.mxu0 %v538
    %576 = vmatprep.subr.mxu0 0.0
    %577 = vmatpush1.msra.mxu0 %v539
    %578 = vmatprep.subr.mxu0 0.0
    %579 = vmatpush1.msra.mxu0 %v540
    %580 = vmatprep.subr.mxu0 0.0
    %581 = vmatpush1.msra.mxu0 0.0
    %582 = vmatprep.subr.mxu0 0.0
    %583 = vmatpush1.msra.mxu0 0.0
    %584 = vmatprep.subr.mxu0 0.0
    %585 = vmatpush1.msra.mxu0 0.0
    %586 = vmatprep.subr.mxu0 0.0
    %587 = vmatpush1.msra.mxu0 0.0
    %588 = vmatprep.subr.mxu0 0.0
    %589 = vmatpush1.msra.mxu0 0.0
    %590 = vmatprep.subr.mxu0 0.0
    %591 = vmatpush1.msra.mxu0 0.0
    %592 = vmatprep.subr.mxu0 0.0
    %593 = vmatpush1.msra.mxu0 0.0
    %594 = vmatprep.subr.mxu0 0.0
    %595 = vmatpush1.msra.mxu0 0.0
    %596 = vmatprep.subr.mxu0 0.0
    %597 = vmatpush1.msra.mxu0 0.0
    %598 = vmatprep.subr.mxu0 0.0
    %599 = vmatpush1.msra.mxu0 0.0
    %600 = vmatprep.subr.mxu0 0.0
    %601 = vmatpush1.msra.mxu0 0.0
    %602 = vmatprep.subr.mxu0 0.0
    %603 = vmatpush1.msra.mxu0 0.0
    %604 = vmatprep.subr.mxu0 0.0
    %605 = vmatpush1.msra.mxu0 0.0
    %606 = vmatprep.subr.mxu0 0.0
    %607 = vmatpush1.msra.mxu0 0.0
    %608 = vmatprep.subr.mxu0 0.0
    %609 = vmatpush1.msra.mxu0 0.0
    %610 = vmatprep.subr.mxu0 0.0
    %611 = vmatpush1.msra.mxu0 0.0
    %612 = vmatprep.mubr.f32.mxu0 0.0
    %613 = vmatmul.mubr.f32.gmra.mrb[0].mxu0 %v524
    %v614 = vpop.f32.mrb[0].mxu0
    %v615 = vadd.f32 %v546, %v614
    %v616 = vpop.f32.mrb[0].mxu0
    %617 = vdwg.mxu0
    %618 = vst [vmem:[#allocation14] sm:$0xff] %v615
    // Predicated region
    $region46: #{tpu_custom_call.1} parent=1 // pred_check
      _
    $region47: #{tpu_custom_call.1} parent=1 // pred_check_branch
      %620 = sbr.rel (0) target = $region49
    $region48: #{tpu_custom_call.1} parent=1 // pred_region
      %s622 = ssub.s32 128, 128
      %623 = vsyncadd [#allocation8], %s622
      %s625 = sshll.u32 [#allocation14], 4
      %s626 = int_to_ptr.vmem [resolvable:$true] %s625
      %628 = dma.vmem_to_hbm [thread:$0]  %s626, 128, %s7, [#allocation8]
    $region49: #{tpu_custom_call.1} parent=1 // pred_fallthru
      _
    // Predicated region
    $region50: #{tpu_custom_call.1} parent=1 // pred_check
      _
    $region51: #{tpu_custom_call.1} parent=1 // pred_check_branch
      %630 = sbr.rel (0) target = $region53
    $region52: #{tpu_custom_call.1} parent=1 // pred_region
      %s632 = ssub.s32 128, 128
      %633 = vsyncadd [#allocation16], %s632
      %s635 = sshll.u32 [#allocation15], 4
      %s636 = int_to_ptr.vmem [resolvable:$true] %s635
      %638 = dma.vmem_to_hbm [thread:$0]  %s636, 128, %s8, [#allocation16]
    $region53: #{tpu_custom_call.1} parent=1 // pred_fallthru
      _
    // Predicated region
    $region54: #{tpu_custom_call.1} parent=1 // pred_check
      _
    $region55: #{tpu_custom_call.1} parent=1 // pred_check_branch
      %640 = sbr.rel (0) target = $region57
    $region56: #{tpu_custom_call.1} parent=1 // pred_region
      %641 = dma.done [#allocation8], 128
    $region57: #{tpu_custom_call.1} parent=1 // pred_fallthru
      _
    // Predicated region
    $region58: #{tpu_custom_call.1} parent=1 // pred_check
      _
    $region59: #{tpu_custom_call.1} parent=1 // pred_check_branch
      %643 = sbr.rel (0) target = $region61
    $region60: #{tpu_custom_call.1} parent=1 // pred_region
      %644 = dma.done [#allocation16], 128
    $region61: #{tpu_custom_call.1} parent=1 // pred_fallthru
      _
    %645 = vsyncpa [#allocation7], 1
    %646 = vsyncpa [#allocation10], 1
    %647 = vsyncpa [#allocation13], 1
    %648 = vsyncpa [#allocation8], 1
    %649 = vsyncpa [#allocation16], 1

</llo_original>
